<compile_context>
chip_gen: v6e
topology: v6e:2x2x1
jax: 0.10.0
libtpu: 0.0.40
codegen_flags: <defaults>
</compile_context>

<pallas_src>
import jax
import jax.numpy as jnp
from jax.experimental import pallas as pl
from jax.experimental.pallas import tpu as pltpu


# Below this batch size, kernel-launch + grid overhead dominates -> plain XLA.
_SMALL_BATCH = 2048
# Cap on the batch tile: a (32768, 10) f32 tile is 1.25 MiB, so double-buffered
# inputs + output stay far inside the default scoped-VMEM limit on v5e/v6e/v7x.
_TILE_MAX = 32768


def _net_kernel(bias_ref, x1_ref, x2_ref, w1_ref, w2_ref, o_ref):
    # bias_ref : SMEM (1,)           fused scalar b1 + b2 + x3 (scalar prefetch)
    # x1_ref   : VMEM (TILE_B, 10)   natural layout, caller dtype
    # x2_ref   : VMEM (TILE_B, 10)
    # w1_ref   : VMEM (10, 1)        f32 weight column (VMEM-resident, const map)
    # w2_ref   : VMEM (10, 1)
    # o_ref    : VMEM (TILE_B, 1)
    x1 = x1_ref[...].astype(jnp.float32)          # in-register upcast, free vs DMA
    x2 = x2_ref[...].astype(jnp.float32)
    y = jnp.dot(x1, w1_ref[...], preferred_element_type=jnp.float32)
    y = y + jnp.dot(x2, w2_ref[...], preferred_element_type=jnp.float32)
    o_ref[...] = (y + bias_ref[0]).astype(o_ref.dtype)


def multiple_input_with_kwargs_net(x1, x2, params, x3=10.0, *, force_kernel=False):
    """forward(x1, x2, x3) = dense1(x1) + dense2(x2) + x3."""
    w1, b1, w2, b2 = params
    B, F1 = x1.shape
    F2 = x2.shape[1]
    out_dtype = jnp.result_type(x1.dtype, w1.dtype)

    # Fold the scalar kwarg into one fused bias.
    bias = (b1 + b2 + jnp.asarray(x3, jnp.float32)).reshape((1,)).astype(jnp.float32)

    if B < _SMALL_BATCH and not force_kernel:
        # Tiny batch: a single fused XLA op beats kernel launch / grid overhead.
        y = (x1.astype(jnp.float32) @ w1.T.astype(jnp.float32)
             + x2.astype(jnp.float32) @ w2.T.astype(jnp.float32) + bias)
        return y.astype(out_dtype)

    # Batch tile: aim for >= 4 grid steps (v7x megacore sharding), sublane (8)
    # aligned, capped so per-step DMA is multi-100KiB (amortizes step overhead).
    tile = 8 * pl.cdiv(pl.cdiv(B, 4), 8)
    tile_b = max(8, min(_TILE_MAX, tile))
    if tile_b >= B:
        tile_b = B          # single full block (block dim == array dim is legal)
    grid = (pl.cdiv(B, tile_b),)

    # Weight columns are tiny (10,1): transposing them in the wrapper is
    # negligible; activations are NOT touched in the wrapper at all.
    w1t = w1.T.astype(jnp.float32)
    w2t = w2.T.astype(jnp.float32)

    out = pl.pallas_call(
        _net_kernel,
        out_shape=jax.ShapeDtypeStruct((B, 1), out_dtype),
        grid_spec=pltpu.PrefetchScalarGridSpec(
            num_scalar_prefetch=1,                  # fused bias -> SMEM
            grid=grid,
            in_specs=[
                pl.BlockSpec((tile_b, F1), lambda i, b: (i, 0)),   # x1 tile
                pl.BlockSpec((tile_b, F2), lambda i, b: (i, 0)),   # x2 tile
                pl.BlockSpec((F1, 1), lambda i, b: (0, 0)),        # w1 (resident)
                pl.BlockSpec((F2, 1), lambda i, b: (0, 0)),        # w2 (resident)
            ],
            out_specs=pl.BlockSpec((tile_b, 1), lambda i, b: (i, 0)),
        ),
        compiler_params=pltpu.CompilerParams(
            dimension_semantics=("parallel",),      # shards grid across 2 TCs on v7x
        ),
    )(bias, x1, x2, w1t, w2t)
    return out


def init_params(key):
    """Deterministic init mimicking nn.Linear(10, 1) uniform(-1/sqrt(10), 1/sqrt(10))."""
    k1, k2, k3, k4 = jax.random.split(key, 4)
    bound = 1.0 / jnp.sqrt(10.0)
    w1 = jax.random.uniform(k1, (1, 10), jnp.float32, -bound, bound)
    b1 = jax.random.uniform(k2, (1,), jnp.float32, -bound, bound)
    w2 = jax.random.uniform(k3, (1, 10), jnp.float32, -bound, bound)
    b2 = jax.random.uniform(k4, (1,), jnp.float32, -bound, bound)
    return (w1, b1, w2, b2)


if __name__ == "__main__":
    key = jax.random.PRNGKey(0)
    kp, kx1, kx2 = jax.random.split(key, 3)

    params = init_params(kp)
    w1, b1, w2, b2 = params
    x3 = 10.0  # default kwarg value of the PyTorch module

    # Small shapes consistent with the module (features fixed at 10).
    B = 256
    x1 = jax.random.normal(kx1, (B, 10), jnp.float32)
    x2 = jax.random.normal(kx2, (B, 10), jnp.float32)

    # Pure-JAX reference (same semantics as the PyTorch forward).
    ref = (x1 @ w1.T + b1) + (x2 @ w2.T + b2) + x3

    # 1) Exercise the Pallas kernel path (grid of 4 batch tiles of 64 rows).
    out_kernel = multiple_input_with_kwargs_net(x1, x2, params, x3, force_kernel=True)
    out_kernel = jax.block_until_ready(out_kernel)
    assert out_kernel.shape == (B, 1)
    assert jnp.allclose(out_kernel, ref, atol=1e-5, rtol=1e-5)

    # 2) Default tiny-batch path (plain XLA fallback per the perf review).
    out_small = multiple_input_with_kwargs_net(x1[:8], x2[:8], params, x3)
    out_small = jax.block_until_ready(out_small)
    assert out_small.shape == (8, 1)
    assert jnp.allclose(out_small, ref[:8], atol=1e-5, rtol=1e-5)

    print("KERNEL_OK")
</pallas_src>

<mosaic_0001>
module attributes {stable_mosaic.version = 11 : i64} {
  func.func @_net_kernel(%arg0: i32, %arg1: memref<1xf32, #tpu.memory_space<smem>>, %arg2: memref<64x10xf32, #tpu.memory_space<vmem>>, %arg3: memref<64x10xf32, #tpu.memory_space<vmem>>, %arg4: memref<10x1xf32, #tpu.memory_space<vmem>>, %arg5: memref<10x1xf32, #tpu.memory_space<vmem>>, %arg6: memref<64x1xf32, #tpu.memory_space<vmem>>) attributes {dimension_semantics = [#tpu.dimension_semantics<parallel>], iteration_bounds = array<i64: 4>, scalar_prefetch = 1 : i64, scratch_operands = 0 : i64, tpu.core_type = #tpu.core_type<tc>, window_params = [{transform_indices = @transform_0, window_bounds = array<i64: 64, 10>}, {transform_indices = @transform_1, window_bounds = array<i64: 64, 10>}, {pipeline_mode = #tpu.pipeline_mode<synchronous>, transform_indices = @transform_2, window_bounds = array<i64: 10, 1>}, {pipeline_mode = #tpu.pipeline_mode<synchronous>, transform_indices = @transform_3, window_bounds = array<i64: 10, 1>}, {transform_indices = @transform_4, window_bounds = array<i64: 64, 1>}]} {
    %c0 = arith.constant 0 : index
    %c0_0 = arith.constant 0 : index
    %0 = vector.load %arg2[%c0, %c0_0] : memref<64x10xf32, #tpu.memory_space<vmem>>, vector<64x10xf32>
    %c0_1 = arith.constant 0 : index
    %c0_2 = arith.constant 0 : index
    %1 = vector.load %arg3[%c0_1, %c0_2] : memref<64x10xf32, #tpu.memory_space<vmem>>, vector<64x10xf32>
    %c0_3 = arith.constant 0 : index
    %c0_4 = arith.constant 0 : index
    %2 = vector.load %arg4[%c0_3, %c0_4] : memref<10x1xf32, #tpu.memory_space<vmem>>, vector<10x1xf32>
    %cst = arith.constant dense<0.000000e+00> : vector<64x1xf32>
    %3 = tpu.matmul %0, %2, %cst {dimension_numbers = #tpu.dot_dimension_numbers<[1], [0], [0], [1], [0, 0, 1, 1], [], []>} : vector<64x10xf32>, vector<10x1xf32>, vector<64x1xf32> -> vector<64x1xf32>
    %c0_5 = arith.constant 0 : index
    %c0_6 = arith.constant 0 : index
    %4 = vector.load %arg5[%c0_5, %c0_6] : memref<10x1xf32, #tpu.memory_space<vmem>>, vector<10x1xf32>
    %cst_7 = arith.constant dense<0.000000e+00> : vector<64x1xf32>
    %5 = tpu.matmul %1, %4, %cst_7 {dimension_numbers = #tpu.dot_dimension_numbers<[1], [0], [0], [1], [0, 0, 1, 1], [], []>} : vector<64x10xf32>, vector<10x1xf32>, vector<64x1xf32> -> vector<64x1xf32>
    %6 = arith.addf %3, %5 : vector<64x1xf32>
    %c0_8 = arith.constant 0 : index
    %7 = memref.load %arg1[%c0_8] : memref<1xf32, #tpu.memory_space<smem>>
    %8 = vector.broadcast %7 : f32 to vector<64x1xf32>
    %9 = arith.addf %6, %8 : vector<64x1xf32>
    %c0_9 = arith.constant 0 : index
    %c0_10 = arith.constant 0 : index
    %10 = vector.load %arg6[%c0_9, %c0_10] : memref<64x1xf32, #tpu.memory_space<vmem>>, vector<64x1xf32>
    tpu.vector_store %arg6[%c0_9, %c0_10], %9 {strides = array<i32>} : memref<64x1xf32, #tpu.memory_space<vmem>>, vector<64x1xf32>,
    return
  }
  func.func @transform_0(%arg0: i32, %arg1: memref<1xf32, #tpu.memory_space<smem>>) -> (i32, i32) {
    %c0_i32 = arith.constant 0 : i32
    %c0_i32_0 = arith.constant 0 : i32
    return %arg0, %c0_i32 : i32, i32
  }
  func.func @transform_1(%arg0: i32, %arg1: memref<1xf32, #tpu.memory_space<smem>>) -> (i32, i32) {
    %c0_i32 = arith.constant 0 : i32
    %c0_i32_0 = arith.constant 0 : i32
    return %arg0, %c0_i32 : i32, i32
  }
  func.func @transform_2(%arg0: i32, %arg1: memref<1xf32, #tpu.memory_space<smem>>) -> (i32, i32) {
    %c0_i32 = arith.constant 0 : i32
    %c0_i32_0 = arith.constant 0 : i32
    %c0_i32_1 = arith.constant 0 : i32
    return %c0_i32, %c0_i32_0 : i32, i32
  }
  func.func @transform_3(%arg0: i32, %arg1: memref<1xf32, #tpu.memory_space<smem>>) -> (i32, i32) {
    %c0_i32 = arith.constant 0 : i32
    %c0_i32_0 = arith.constant 0 : i32
    %c0_i32_1 = arith.constant 0 : i32
    return %c0_i32, %c0_i32_0 : i32, i32
  }
  func.func @transform_4(%arg0: i32, %arg1: memref<1xf32, #tpu.memory_space<smem>>) -> (i32, i32) {
    %c0_i32 = arith.constant 0 : i32
    %c0_i32_0 = arith.constant 0 : i32
    return %arg0, %c0_i32 : i32, i32
  }
}

</mosaic_0001>

<llo_original>
// kernel: tpu_custom_call.1
$region0: #{tpu_custom_call.1}
  #allocation0 [shape = 'u32[]', space=smem, size = 0x4, offset = 0x4, fixed_abs, tag = 'smem constant byte address 0x4 - core index']
  #allocation1 [shape = 'u32[144,128]{1,0:T(1,128)}', space=vmem, size = 0x12000, scoped, tag = 'internal scratch']
  #allocation2 [shape = 's32[1]{0}', space=sflag, size = 0x4, scoped, tag = 'scoped memory for tpu_custom_call.1']
  #allocation3 [shape = 'f32[1]{0:T(128)S(6)}', space=smem, size = 0x200, scoped, tag = 'prefetched SMEM operand 0']
  %s0 = inlined_call_operand.<no memory space> [shape: f32[1], index: 0, kind: input, shape index: {}]
  %s1 = inlined_call_operand.vmem [shape: f32[256,10], index: 1, kind: input, shape index: {}]
  %s2 = inlined_call_operand.vmem [shape: f32[256,10], index: 2, kind: input, shape index: {}]
  %s3 = inlined_call_operand.vmem [shape: f32[10,1], index: 3, kind: input, shape index: {}]
  %s4 = inlined_call_operand.vmem [shape: f32[10,1], index: 4, kind: input, shape index: {}]
  %s5 = inlined_call_operand.vmem [shape: f32[256,1], index: 5, kind: output, shape index: {}]
  %s6 = sld [smem:[#allocation0]]
  $region49: #{tpu_custom_call.1} parent=0
    _
  %s8 = ssub.s32 1, %s6
  %s9 = scalar_select 0, %s8, %s6
  %10 = sst [smem:[#allocation3]] %s0
  loop: start=0, step=1, limit=6
  $region2: #{tpu_custom_call.1} parent=0 // loop_pre_header
    _
  $region3: #{tpu_custom_call.1} parent=0 // loop_header
    %s12 = sphi 0, %s16
    %p13 = scmp.ge.s32.totalorder %s12, 6
    %s22 = sphi 0, %s24
    %s25 = sphi 0, %s22
    %s26 = sphi 0, %s25
    %s42 = sphi 0, %s26
    %s48 = sphi 0, %s50
    %s51 = sphi 0, %s48
    %s52 = sphi 0, %s51
    %s68 = sphi 0, %s52
    %s72 = sphi 0, %s72
    %s74 = sphi 0, %s72
    %s75 = sphi 0, %s74
    %s89 = sphi 0, %s75
    %s93 = sphi 0, %s93
    %s95 = sphi 0, %s93
    %s96 = sphi 0, %s95
    %s110 = sphi 0, %s96
    %s116 = sphi 0, %s118
    %s119 = sphi 0, %s116
    %s120 = sphi 0, %s119
    %s136 = sphi 0, %s120
  $region4: #{tpu_custom_call.1} parent=0 // loop_header_branch
    %15 = sbr.rel (%p13) target = $region8
  $region5: #{tpu_custom_call.1} parent=0 // loop_body
    %s17 = ssub.s32 %s12, 1
    %s18 = ssub.s32 %s12, 2
    %s19 = sadd.s32 %s12, 1
    %s20 = ssub.s32 %s12, %s19
    %p21 = scmp.eq.s32.totalorder %s20, 0
    %s23 = sadd.s32 %s22, 1
    %s24 = scalar_select %p21, %s22, %s23
    %p27 = pneg %p21
    %p28 = scmp.eq.s32.totalorder %s12, 3
    %p29 = por %p27, %p28
    %p30 = scmp.ne.s32.totalorder %s22, %s25
    %p31 = scmp.eq.s32.totalorder %s12, 0
    %p32 = por %p30, %p31
    %p33 = scmp.ne.s32.totalorder %s22, %s25
    %p34 = scmp.eq.s32.totalorder %s17, 3
    %p35 = por %p33, %p34
    %p36 = scmp.ne.s32.totalorder %s25, %s26
    %p37 = scmp.eq.s32.totalorder %s17, 0
    %p38 = por %p36, %p37
    %p39 = scmp.ne.s32.totalorder %s25, %s26
    %p40 = scmp.eq.s32.totalorder %s18, 3
    %p41 = por %p39, %p40
    %p43 = scmp.ne.s32.totalorder %s26, %s42
    %p44 = scmp.eq.s32.totalorder %s18, 0
    %p45 = por %p43, %p44
    %s46 = ssub.s32 %s12, %s19
    %p47 = scmp.eq.s32.totalorder %s46, 0
    %s49 = sadd.s32 %s48, 1
    %s50 = scalar_select %p47, %s48, %s49
    %p53 = pneg %p47
    %p54 = scmp.eq.s32.totalorder %s12, 3
    %p55 = por %p53, %p54
    %p56 = scmp.ne.s32.totalorder %s48, %s51
    %p57 = scmp.eq.s32.totalorder %s12, 0
    %p58 = por %p56, %p57
    %p59 = scmp.ne.s32.totalorder %s48, %s51
    %p60 = scmp.eq.s32.totalorder %s17, 3
    %p61 = por %p59, %p60
    %p62 = scmp.ne.s32.totalorder %s51, %s52
    %p63 = scmp.eq.s32.totalorder %s17, 0
    %p64 = por %p62, %p63
    %p65 = scmp.ne.s32.totalorder %s51, %s52
    %p66 = scmp.eq.s32.totalorder %s18, 3
    %p67 = por %p65, %p66
    %p69 = scmp.ne.s32.totalorder %s52, %s68
    %p70 = scmp.eq.s32.totalorder %s18, 0
    %p71 = por %p69, %p70
    %s73 = sadd.s32 %s72, 1
    %p76 = scmp.eq.s32.totalorder %s12, 3
    %p77 = scmp.ne.s32.totalorder %s72, %s74
    %p78 = scmp.eq.s32.totalorder %s12, 0
    %p79 = por %p77, %p78
    %p80 = scmp.ne.s32.totalorder %s72, %s74
    %p81 = scmp.eq.s32.totalorder %s17, 3
    %p82 = por %p80, %p81
    %p83 = scmp.ne.s32.totalorder %s74, %s75
    %p84 = scmp.eq.s32.totalorder %s17, 0
    %p85 = por %p83, %p84
    %p86 = scmp.ne.s32.totalorder %s74, %s75
    %p87 = scmp.eq.s32.totalorder %s18, 3
    %p88 = por %p86, %p87
    %p90 = scmp.ne.s32.totalorder %s75, %s89
    %p91 = scmp.eq.s32.totalorder %s18, 0
    %p92 = por %p90, %p91
    %s94 = sadd.s32 %s93, 1
    %p97 = scmp.eq.s32.totalorder %s12, 3
    %p98 = scmp.ne.s32.totalorder %s93, %s95
    %p99 = scmp.eq.s32.totalorder %s12, 0
    %p100 = por %p98, %p99
    %p101 = scmp.ne.s32.totalorder %s93, %s95
    %p102 = scmp.eq.s32.totalorder %s17, 3
    %p103 = por %p101, %p102
    %p104 = scmp.ne.s32.totalorder %s95, %s96
    %p105 = scmp.eq.s32.totalorder %s17, 0
    %p106 = por %p104, %p105
    %p107 = scmp.ne.s32.totalorder %s95, %s96
    %p108 = scmp.eq.s32.totalorder %s18, 3
    %p109 = por %p107, %p108
    %p111 = scmp.ne.s32.totalorder %s96, %s110
    %p112 = scmp.eq.s32.totalorder %s18, 0
    %p113 = por %p111, %p112
    %s114 = ssub.s32 %s12, %s19
    %p115 = scmp.eq.s32.totalorder %s114, 0
    %s117 = sadd.s32 %s116, 1
    %s118 = scalar_select %p115, %s116, %s117
    %p121 = pneg %p115
    %p122 = scmp.eq.s32.totalorder %s12, 3
    %p123 = por %p121, %p122
    %p124 = scmp.ne.s32.totalorder %s116, %s119
    %p125 = scmp.eq.s32.totalorder %s12, 0
    %p126 = por %p124, %p125
    %p127 = scmp.ne.s32.totalorder %s116, %s119
    %p128 = scmp.eq.s32.totalorder %s17, 3
    %p129 = por %p127, %p128
    %p130 = scmp.ne.s32.totalorder %s119, %s120
    %p131 = scmp.eq.s32.totalorder %s17, 0
    %p132 = por %p130, %p131
    %p133 = scmp.ne.s32.totalorder %s119, %s120
    %p134 = scmp.eq.s32.totalorder %s18, 3
    %p135 = por %p133, %p134
    %p137 = scmp.ne.s32.totalorder %s120, %s136
    %p138 = scmp.eq.s32.totalorder %s18, 0
    %p139 = por %p137, %p138
    %p140 = scmp.le.s32.totalorder 1, %s12
    %p141 = scmp.lt.s32.totalorder %s12, 5
    %p142 = pnand %p140, %p141
    %p143 = pneg %p142
    // Predicated region
    $region9: #{tpu_custom_call.1} parent=5 // pred_check
      _
    $region10: #{tpu_custom_call.1} parent=5 // pred_check_branch
      %145 = sbr.rel (%p142) target = $region12
    $region11: #{tpu_custom_call.1} parent=5 // pred_region
      %s146 = ssub.s32 %s12, 1
      // Predicated region
      $region13: #{tpu_custom_call.1} parent=11 // pred_check
        %p147 = pneg %p85
      $region14: #{tpu_custom_call.1} parent=11 // pred_check_branch
        %149 = sbr.rel (%p147) target = $region16
      $region15: #{tpu_custom_call.1} parent=11 // pred_region
        _
      $region16: #{tpu_custom_call.1} parent=11 // pred_fallthru
        _
      // Predicated region
      $region17: #{tpu_custom_call.1} parent=11 // pred_check
        %p150 = pneg %p106
      $region18: #{tpu_custom_call.1} parent=11 // pred_check_branch
        %152 = sbr.rel (%p150) target = $region20
      $region19: #{tpu_custom_call.1} parent=11 // pred_region
        _
      $region20: #{tpu_custom_call.1} parent=11 // pred_fallthru
        _
    $region12: #{tpu_custom_call.1} parent=5 // pred_fallthru
      _
    %p153 = scmp.lt.s32.totalorder %s12, 4
    // Predicated region
    $region21: #{tpu_custom_call.1} parent=5 // pred_check
      %p154 = pneg %p153
    $region22: #{tpu_custom_call.1} parent=5 // pred_check_branch
      %156 = sbr.rel (%p154) target = $region24
    $region23: #{tpu_custom_call.1} parent=5 // pred_region
      // Predicated region
      $region25: #{tpu_custom_call.1} parent=23 // pred_check
        %p157 = pneg %p32
      $region26: #{tpu_custom_call.1} parent=23 // pred_check_branch
        %159 = sbr.rel (%p157) target = $region28
      $region27: #{tpu_custom_call.1} parent=23 // pred_region
        %s160 = smul.u32 8, %s12
        %p161 = scmp.lt.s32.totalorder %s160, 31
        %s162 = scalar_select %p161, %s160, 31
        %s163 = smul.addr %s162, 8
        %s164 = scalar_lea.vmem %s1, %s163
        %s165 = smul.u32 8, %s12
      $region28: #{tpu_custom_call.1} parent=23 // pred_fallthru
        _
      // Predicated region
      $region29: #{tpu_custom_call.1} parent=23 // pred_check
        %p166 = pneg %p58
      $region30: #{tpu_custom_call.1} parent=23 // pred_check_branch
        %168 = sbr.rel (%p166) target = $region32
      $region31: #{tpu_custom_call.1} parent=23 // pred_region
        %s169 = smul.u32 8, %s12
        %p170 = scmp.lt.s32.totalorder %s169, 31
        %s171 = scalar_select %p170, %s169, 31
        %s172 = smul.addr %s171, 8
        %s173 = scalar_lea.vmem %s2, %s172
        %s174 = smul.u32 8, %s12
      $region32: #{tpu_custom_call.1} parent=23 // pred_fallthru
        _
    $region24: #{tpu_custom_call.1} parent=5 // pred_fallthru
      _
    %p175 = scmp.le.s32.totalorder 1, %s12
    %p176 = scmp.lt.s32.totalorder %s12, 5
    %p177 = pnand %p175, %p176
    %p178 = pneg %p177
    // Predicated region
    $region33: #{tpu_custom_call.1} parent=5 // pred_check
      _
    $region34: #{tpu_custom_call.1} parent=5 // pred_check_branch
      %180 = sbr.rel (%p177) target = $region36
    $region35: #{tpu_custom_call.1} parent=5 // pred_region
      %s181 = ssub.s32 %s12, 1
      %s182 = smul.u32 8, %s17
      %p183 = scmp.lt.s32.totalorder %s182, 31
      %s184 = scalar_select %p183, %s182, 31
      %s185 = smul.addr %s184, 8
      %s186 = scalar_lea.vmem %s1, %s185
      %p187 = pneg %p38
      %p188 = pneg %p35
      %s189 = smul.u32 8, %s17
      %p190 = scmp.lt.s32.totalorder %s189, 31
      %s191 = scalar_select %p190, %s189, 31
      %s192 = smul.addr %s191, 8
      %s193 = scalar_lea.vmem %s2, %s192
      %p194 = pneg %p64
      %p195 = pneg %p61
      %p196 = pneg %p85
      %p197 = pneg %p82
      %p198 = pneg %p106
      %p199 = pneg %p103
      %p200 = pneg %p132
      %p201 = pneg %p129
      %s202 = smul.u32 8, %s17
      %p203 = scmp.lt.s32.totalorder %s202, 31
      %s204 = scalar_select %p203, %s202, 31
      %s205 = smul.addr %s204, 8
      %s206 = scalar_lea.vmem %s5, %s205
      %s207 = smul.u32 8, %s17
      %p208 = scmp.lt.s32.totalorder %s207, 31
      %s209 = scalar_select %p208, %s207, 31
      %s210 = smul.addr %s209, 8
      %s211 = scalar_lea.vmem %s1, %s210
      %s212 = smul.u32 8, %s17
      %s213 = smul.u32 8, %s17
      %p214 = scmp.lt.s32.totalorder %s213, 31
      %s215 = scalar_select %p214, %s213, 31
      %s216 = smul.addr %s215, 8
      %s217 = scalar_lea.vmem %s2, %s216
      %s218 = smul.u32 8, %s17
      %s219 = smul.u32 8, %s17
      %p220 = scmp.lt.s32.totalorder %s219, 31
      %s221 = scalar_select %p220, %s219, 31
      %s222 = smul.addr %s221, 8
      %s223 = scalar_lea.vmem %s5, %s222
      %s224 = smul.u32 8, %s17
      %v225 = vld [vmem:[%s211] sm:$0xff]
      %v226 = vld [vmem:[%s211 + $0x8] sm:$0xff]
      %v227 = vld [vmem:[%s211 + $0x10] sm:$0xff]
      %v228 = vld [vmem:[%s211 + $0x18] sm:$0xff]
      %v229 = vld [vmem:[%s211 + $0x20] sm:$0xff]
      %v230 = vld [vmem:[%s211 + $0x28] sm:$0xff]
      %v231 = vld [vmem:[%s211 + $0x30] sm:$0xff]
      %v232 = vld [vmem:[%s211 + $0x38] sm:$0xff]
      %v233 = vld [vmem:[%s217] sm:$0xff]
      %v234 = vld [vmem:[%s217 + $0x8] sm:$0xff]
      %v235 = vld [vmem:[%s217 + $0x10] sm:$0xff]
      %v236 = vld [vmem:[%s217 + $0x18] sm:$0xff]
      %v237 = vld [vmem:[%s217 + $0x20] sm:$0xff]
      %v238 = vld [vmem:[%s217 + $0x28] sm:$0xff]
      %v239 = vld [vmem:[%s217 + $0x30] sm:$0xff]
      %v240 = vld [vmem:[%s217 + $0x38] sm:$0xff]
      %v241 = vld [vmem:[%s3] sm:$0xff]
      %v242 = vld [vmem:[%s3 + $0x8] sm:$0x3]
      %v243 = vld [vmem:[%s4] sm:$0xff]
      %v244 = vld [vmem:[%s4 + $0x8] sm:$0x3]
      %vm245 = vcmask 80896
      %v247 = vsel %vm245, %v233, 0
      %v250 = vsel %vm245, %v234, 0
      %v253 = vsel %vm245, %v235, 0
      %v256 = vsel %vm245, %v236, 0
      %v259 = vsel %vm245, %v237, 0
      %v262 = vsel %vm245, %v238, 0
      %v265 = vsel %vm245, %v239, 0
      %v268 = vsel %vm245, %v240, 0
      %vm270 = vcmask 1041408
      %v272 = vsel %vm270, %v244, 0
      %274 = vmatprep.subr.mxu0 0.0
      %275 = vmatpush1.msra.mxu0 0.0
      %276 = vmatprep.subr.mxu0 0.0
      %277 = vmatpush1.msra.mxu0 0.0
      %278 = vmatprep.subr.mxu0 0.0
      %279 = vmatpush1.msra.mxu0 0.0
      %280 = vmatprep.subr.mxu0 0.0
      %281 = vmatpush1.msra.mxu0 0.0
      %282 = vmatprep.subr.mxu0 0.0
      %283 = vmatpush1.msra.mxu0 0.0
      %284 = vmatprep.subr.mxu0 0.0
      %285 = vmatpush1.msra.mxu0 0.0
      %286 = vmatprep.subr.mxu0 0.0
      %287 = vmatpush1.msra.mxu0 0.0
      %288 = vmatprep.subr.mxu0 0.0
      %289 = vmatpush1.msra.mxu0 0.0
      %290 = vmatprep.subr.mxu0 0.0
      %291 = vmatpush1.msra.mxu0 0.0
      %292 = vmatprep.subr.mxu0 0.0
      %293 = vmatpush1.msra.mxu0 0.0
      %294 = vmatprep.subr.mxu0 0.0
      %295 = vmatpush1.msra.mxu0 0.0
      %296 = vmatprep.subr.mxu0 0.0
      %297 = vmatpush1.msra.mxu0 0.0
      %298 = vmatprep.subr.mxu0 0.0
      %299 = vmatpush1.msra.mxu0 0.0
      %300 = vmatprep.subr.mxu0 0.0
      %301 = vmatpush1.msra.mxu0 0.0
      %302 = vmatprep.subr.mxu0 0.0
      %303 = vmatpush1.msra.mxu0 %v272
      %304 = vmatprep.subr.mxu0 0.0
      %305 = vmatpush1.msra.mxu0 %v243
      %306 = vmatprep.subr.mxu0 0.0
      %307 = vmatpush2.msra.mxu0 0.0
      %308 = vmatprep.subr.mxu0 0.0
      %309 = vmatpush2.msra.mxu0 0.0
      %310 = vmatprep.subr.mxu0 0.0
      %311 = vmatpush2.msra.mxu0 0.0
      %312 = vmatprep.subr.mxu0 0.0
      %313 = vmatpush2.msra.mxu0 0.0
      %314 = vmatprep.subr.mxu0 0.0
      %315 = vmatpush2.msra.mxu0 0.0
      %316 = vmatprep.subr.mxu0 0.0
      %317 = vmatpush2.msra.mxu0 0.0
      %318 = vmatprep.subr.mxu0 0.0
      %319 = vmatpush2.msra.mxu0 0.0
      %320 = vmatprep.subr.mxu0 0.0
      %321 = vmatpush2.msra.mxu0 0.0
      %322 = vmatprep.subr.mxu0 0.0
      %323 = vmatpush2.msra.mxu0 0.0
      %324 = vmatprep.subr.mxu0 0.0
      %325 = vmatpush2.msra.mxu0 0.0
      %326 = vmatprep.subr.mxu0 0.0
      %327 = vmatpush2.msra.mxu0 0.0
      %328 = vmatprep.subr.mxu0 0.0
      %329 = vmatpush2.msra.mxu0 0.0
      %330 = vmatprep.subr.mxu0 0.0
      %331 = vmatpush2.msra.mxu0 0.0
      %332 = vmatprep.subr.mxu0 0.0
      %333 = vmatpush2.msra.mxu0 0.0
      %334 = vmatprep.subr.mxu0 0.0
      %335 = vmatpush2.msra.mxu0 0.0
      %336 = vmatprep.subr.mxu0 0.0
      %337 = vmatpush2.msra.mxu0 0.0
      %338 = vmatprep.mubr.f32.mxu0 0.0
      %339 = vmatmul.mubr.f32.gmra.mxu0 %v247
      %v340 = vpop.f32.mrf.mxu0
      %v341 = vadd.f32 0.0, %v340
      %v342 = vpop.f32.mrf.mxu0
      %343 = vmatprep.mubr.f32.mxu0 0.0
      %344 = vmatmul.mubr.f32.gmra.mxu0 %v250
      %v345 = vpop.f32.mrf.mxu0
      %v346 = vadd.f32 0.0, %v345
      %v347 = vpop.f32.mrf.mxu0
      %348 = vmatprep.mubr.f32.mxu0 0.0
      %349 = vmatmul.mubr.f32.gmra.mxu0 %v253
      %v350 = vpop.f32.mrf.mxu0
      %v351 = vadd.f32 0.0, %v350
      %v352 = vpop.f32.mrf.mxu0
      %353 = vmatprep.mubr.f32.mxu0 0.0
      %354 = vmatmul.mubr.f32.gmra.mxu0 %v256
      %v355 = vpop.f32.mrf.mxu0
      %v356 = vadd.f32 0.0, %v355
      %v357 = vpop.f32.mrf.mxu0
      %358 = vmatprep.mubr.f32.mxu0 0.0
      %359 = vmatmul.mubr.f32.gmra.mxu0 %v259
      %v360 = vpop.f32.mrf.mxu0
      %v361 = vadd.f32 0.0, %v360
      %v362 = vpop.f32.mrf.mxu0
      %363 = vmatprep.mubr.f32.mxu0 0.0
      %364 = vmatmul.mubr.f32.gmra.mxu0 %v262
      %v365 = vpop.f32.mrf.mxu0
      %v366 = vadd.f32 0.0, %v365
      %v367 = vpop.f32.mrf.mxu0
      %368 = vmatprep.mubr.f32.mxu0 0.0
      %369 = vmatmul.mubr.f32.gmra.mxu0 %v265
      %v370 = vpop.f32.mrf.mxu0
      %v371 = vadd.f32 0.0, %v370
      %v372 = vpop.f32.mrf.mxu0
      %373 = vmatprep.mubr.f32.mxu0 0.0
      %374 = vmatmul.mubr.f32.gmra.mxu0 %v268
      %v375 = vpop.f32.mrf.mxu0
      %v376 = vadd.f32 0.0, %v375
      %v377 = vpop.f32.mrf.mxu0
      %378 = vdwg.mxu0
      %v380 = vsel %vm245, %v225, 0
      %v383 = vsel %vm245, %v226, 0
      %v386 = vsel %vm245, %v227, 0
      %v389 = vsel %vm245, %v228, 0
      %v392 = vsel %vm245, %v229, 0
      %v395 = vsel %vm245, %v230, 0
      %v398 = vsel %vm245, %v231, 0
      %v401 = vsel %vm245, %v232, 0
      %v404 = vsel %vm270, %v242, 0
      %406 = vmatprep.subr.mxu0 0.0
      %407 = vmatpush1.msra.mxu0 0.0
      %408 = vmatprep.subr.mxu0 0.0
      %409 = vmatpush1.msra.mxu0 0.0
      %410 = vmatprep.subr.mxu0 0.0
      %411 = vmatpush1.msra.mxu0 0.0
      %412 = vmatprep.subr.mxu0 0.0
      %413 = vmatpush1.msra.mxu0 0.0
      %414 = vmatprep.subr.mxu0 0.0
      %415 = vmatpush1.msra.mxu0 0.0
      %416 = vmatprep.subr.mxu0 0.0
      %417 = vmatpush1.msra.mxu0 0.0
      %418 = vmatprep.subr.mxu0 0.0
      %419 = vmatpush1.msra.mxu0 0.0
      %420 = vmatprep.subr.mxu0 0.0
      %421 = vmatpush1.msra.mxu0 0.0
      %422 = vmatprep.subr.mxu0 0.0
      %423 = vmatpush1.msra.mxu0 0.0
      %424 = vmatprep.subr.mxu0 0.0
      %425 = vmatpush1.msra.mxu0 0.0
      %426 = vmatprep.subr.mxu0 0.0
      %427 = vmatpush1.msra.mxu0 0.0
      %428 = vmatprep.subr.mxu0 0.0
      %429 = vmatpush1.msra.mxu0 0.0
      %430 = vmatprep.subr.mxu0 0.0
      %431 = vmatpush1.msra.mxu0 0.0
      %432 = vmatprep.subr.mxu0 0.0
      %433 = vmatpush1.msra.mxu0 0.0
      %434 = vmatprep.subr.mxu0 0.0
      %435 = vmatpush1.msra.mxu0 %v404
      %436 = vmatprep.subr.mxu0 0.0
      %437 = vmatpush1.msra.mxu0 %v241
      %438 = vmatprep.subr.mxu0 0.0
      %439 = vmatpush2.msra.mxu0 0.0
      %440 = vmatprep.subr.mxu0 0.0
      %441 = vmatpush2.msra.mxu0 0.0
      %442 = vmatprep.subr.mxu0 0.0
      %443 = vmatpush2.msra.mxu0 0.0
      %444 = vmatprep.subr.mxu0 0.0
      %445 = vmatpush2.msra.mxu0 0.0
      %446 = vmatprep.subr.mxu0 0.0
      %447 = vmatpush2.msra.mxu0 0.0
      %448 = vmatprep.subr.mxu0 0.0
      %449 = vmatpush2.msra.mxu0 0.0
      %450 = vmatprep.subr.mxu0 0.0
      %451 = vmatpush2.msra.mxu0 0.0
      %452 = vmatprep.subr.mxu0 0.0
      %453 = vmatpush2.msra.mxu0 0.0
      %454 = vmatprep.subr.mxu0 0.0
      %455 = vmatpush2.msra.mxu0 0.0
      %456 = vmatprep.subr.mxu0 0.0
      %457 = vmatpush2.msra.mxu0 0.0
      %458 = vmatprep.subr.mxu0 0.0
      %459 = vmatpush2.msra.mxu0 0.0
      %460 = vmatprep.subr.mxu0 0.0
      %461 = vmatpush2.msra.mxu0 0.0
      %462 = vmatprep.subr.mxu0 0.0
      %463 = vmatpush2.msra.mxu0 0.0
      %464 = vmatprep.subr.mxu0 0.0
      %465 = vmatpush2.msra.mxu0 0.0
      %466 = vmatprep.subr.mxu0 0.0
      %467 = vmatpush2.msra.mxu0 0.0
      %468 = vmatprep.subr.mxu0 0.0
      %469 = vmatpush2.msra.mxu0 0.0
      %470 = vmatprep.mubr.f32.mxu0 0.0
      %471 = vmatmul.mubr.f32.gmra.mxu0 %v380
      %v472 = vpop.f32.mrf.mxu0
      %v473 = vadd.f32 %v341, %v472
      %v474 = vpop.f32.mrf.mxu0
      %475 = vmatprep.mubr.f32.mxu0 0.0
      %476 = vmatmul.mubr.f32.gmra.mxu0 %v383
      %v477 = vpop.f32.mrf.mxu0
      %v478 = vadd.f32 %v346, %v477
      %v479 = vpop.f32.mrf.mxu0
      %480 = vmatprep.mubr.f32.mxu0 0.0
      %481 = vmatmul.mubr.f32.gmra.mxu0 %v386
      %v482 = vpop.f32.mrf.mxu0
      %v483 = vadd.f32 %v351, %v482
      %v484 = vpop.f32.mrf.mxu0
      %485 = vmatprep.mubr.f32.mxu0 0.0
      %486 = vmatmul.mubr.f32.gmra.mxu0 %v389
      %v487 = vpop.f32.mrf.mxu0
      %v488 = vadd.f32 %v356, %v487
      %v489 = vpop.f32.mrf.mxu0
      %490 = vmatprep.mubr.f32.mxu0 0.0
      %491 = vmatmul.mubr.f32.gmra.mxu0 %v392
      %v492 = vpop.f32.mrf.mxu0
      %v493 = vadd.f32 %v361, %v492
      %v494 = vpop.f32.mrf.mxu0
      %495 = vmatprep.mubr.f32.mxu0 0.0
      %496 = vmatmul.mubr.f32.gmra.mxu0 %v395
      %v497 = vpop.f32.mrf.mxu0
      %v498 = vadd.f32 %v366, %v497
      %v499 = vpop.f32.mrf.mxu0
      %500 = vmatprep.mubr.f32.mxu0 0.0
      %501 = vmatmul.mubr.f32.gmra.mxu0 %v398
      %v502 = vpop.f32.mrf.mxu0
      %v503 = vadd.f32 %v371, %v502
      %v504 = vpop.f32.mrf.mxu0
      %505 = vmatprep.mubr.f32.mxu0 0.0
      %506 = vmatmul.mubr.f32.gmra.mxu0 %v401
      %v507 = vpop.f32.mrf.mxu0
      %v508 = vadd.f32 %v376, %v507
      %v509 = vpop.f32.mrf.mxu0
      %510 = vdwg.mxu0
      %s511 = sld [smem:[#allocation3]]
      %v512 = vstv %s511
      %v513 = vadd.f32 %v473, %v512
      %v514 = vadd.f32 %v478, %v512
      %v515 = vadd.f32 %v483, %v512
      %v516 = vadd.f32 %v488, %v512
      %v517 = vadd.f32 %v493, %v512
      %v518 = vadd.f32 %v498, %v512
      %v519 = vadd.f32 %v503, %v512
      %v520 = vadd.f32 %v508, %v512
      %vm521 = vcmask 7168
      %522 = vst.msk [vmem:[%s223] sm:$0xff] %vm521, %v513
      %523 = vst.msk [vmem:[%s223 + $0x8] sm:$0xff] %vm521, %v514
      %524 = vst.msk [vmem:[%s223 + $0x10] sm:$0xff] %vm521, %v515
      %525 = vst.msk [vmem:[%s223 + $0x18] sm:$0xff] %vm521, %v516
      %526 = vst.msk [vmem:[%s223 + $0x20] sm:$0xff] %vm521, %v517
      %527 = vst.msk [vmem:[%s223 + $0x28] sm:$0xff] %vm521, %v518
      %528 = vst.msk [vmem:[%s223 + $0x30] sm:$0xff] %vm521, %v519
      %529 = vst.msk [vmem:[%s223 + $0x38] sm:$0xff] %vm521, %v520
      %s530 = smul.u32 8, %s17
      %p531 = scmp.lt.s32.totalorder %s530, 31
      %s532 = scalar_select %p531, %s530, 31
      %s533 = smul.addr %s532, 8
      %s534 = scalar_lea.vmem %s5, %s533
      // Predicated region
      $region37: #{tpu_custom_call.1} parent=35 // pred_check
        %p535 = pneg %p129
      $region38: #{tpu_custom_call.1} parent=35 // pred_check_branch
        %537 = sbr.rel (%p535) target = $region40
      $region39: #{tpu_custom_call.1} parent=35 // pred_region
        %s538 = smul.u32 8, %s17
      $region40: #{tpu_custom_call.1} parent=35 // pred_fallthru
        _
    $region36: #{tpu_custom_call.1} parent=5 // pred_fallthru
      _
    %p539 = scmp.le.s32.totalorder 2, %s12
    // Predicated region
    $region41: #{tpu_custom_call.1} parent=5 // pred_check
      %p540 = pneg %p539
    $region42: #{tpu_custom_call.1} parent=5 // pred_check_branch
      %542 = sbr.rel (%p540) target = $region44
    $region43: #{tpu_custom_call.1} parent=5 // pred_region
      %s543 = ssub.s32 %s12, 2
      // Predicated region
      $region45: #{tpu_custom_call.1} parent=43 // pred_check
        %p544 = pneg %p135
      $region46: #{tpu_custom_call.1} parent=43 // pred_check_branch
        %546 = sbr.rel (%p544) target = $region48
      $region47: #{tpu_custom_call.1} parent=43 // pred_region
        %s547 = smul.u32 8, %s18
        %p548 = scmp.lt.s32.totalorder %s547, 31
        %s549 = scalar_select %p548, %s547, 31
        %s550 = smul.addr %s549, 8
        %s551 = scalar_lea.vmem %s5, %s550
      $region48: #{tpu_custom_call.1} parent=43 // pred_fallthru
        _
    $region44: #{tpu_custom_call.1} parent=5 // pred_fallthru
      _
  $region6: #{tpu_custom_call.1} parent=0 // loop_footer
    %s16 = sadd.s32 1, %s12
  $region7: #{tpu_custom_call.1} parent=0 // loop_footer_branch
    %11 = sbr.rel target = $region3
  $region8: #{tpu_custom_call.1} parent=0 // loop_exit
    _

</llo_original>
